<compile_context>
chip_gen: v6e
topology: v6e:2x2x1
jax: 0.10.0
libtpu: 0.0.40
codegen_flags: <defaults>
</compile_context>

<pallas_src>
import math

import jax
import jax.numpy as jnp
from jax.experimental import pallas as pl
from jax.experimental.pallas import tpu as pltpu

_INV_SQRT2 = 1.0 / math.sqrt(2.0)
_LANES = 128


def _epilogue(y, scale_factor, m_valid, out_shape, out_dtype):
    """bias-added pre-activation (tb, M_pad) -> lane-broadcast row max (tb, 128)."""
    # Exact GELU (PyTorch F.gelu default): 0.5*x*(1+erf(x/sqrt(2)))
    g = 0.5 * y * (1.0 + jax.lax.erf(y * _INV_SQRT2))
    s = g * scale_factor
    if m_valid < y.shape[-1]:
        # Padded lanes would contribute GELU(0)*scale = 0; mask them out of the max.
        col = jax.lax.broadcasted_iota(jnp.int32, s.shape, dimension=1)
        s = jnp.where(col < m_valid, s, -jnp.inf)
    m = jnp.max(s, axis=-1, keepdims=True)                     # (tb, 1)
    # Lane-dense store: broadcast the row max across 128 lanes (unmasked vst).
    return jnp.broadcast_to(m, out_shape).astype(out_dtype)


def _make_single_pass_kernel(scale_factor, m_valid):
    """nbk == 1: whole reduction in one MXU pass, no scratch, no pl.when."""
    def kernel(x_ref, w_ref, b_ref, o_ref):
        y = jnp.dot(x_ref[...], w_ref[...], preferred_element_type=jnp.float32)
        y = y + b_ref[...]                                     # folded bias (1, M_pad)
        o_ref[...] = _epilogue(y, scale_factor, m_valid, o_ref.shape, o_ref.dtype)
    return kernel


def _make_ktiled_kernel(scale_factor, m_valid):
    """nbk > 1: K is the last ('arbitrary') grid axis with an f32 VMEM accumulator."""
    def kernel(x_ref, w_ref, b_ref, o_ref, acc_ref):
        k = pl.program_id(1)

        @pl.when(k == 0)
        def _():
            # Seed the accumulator with the folded bias -> no extra add in the finalize.
            acc_ref[...] = jnp.broadcast_to(b_ref[...], acc_ref.shape)

        acc_ref[...] += jnp.dot(x_ref[...], w_ref[...],
                                preferred_element_type=jnp.float32)

        @pl.when(k == pl.num_programs(1) - 1)
        def _():
            o_ref[...] = _epilogue(acc_ref[...], scale_factor, m_valid,
                                   o_ref.shape, o_ref.dtype)
    return kernel


def matmul_avgpool_gelu_scale_max(x, weight, bias, pool_kernel_size, scale_factor):
    """x: (B, in_features) f32; weight: (out_features, in_features); bias: (out_features,)
    Returns (B,) f32, matching the PyTorch module_fn."""
    B, K = x.shape
    N, K2 = weight.shape
    assert K == K2, "in_features mismatch"
    assert N % pool_kernel_size == 0, "out_features must be divisible by pool kernel"
    M = N // pool_kernel_size
    scale_factor = float(scale_factor)

    # --- Fold avg-pool + bias into the weight (everything before GELU is linear) ---
    #   pooled = (x @ weight.T + bias) avg-pooled  ==  x @ W' + b'
    w_folded = jnp.transpose(weight).reshape(K, M, pool_kernel_size).mean(axis=-1)
    w_folded = w_folded.astype(jnp.float32)                    # (K, M)
    b_folded = bias.reshape(M, pool_kernel_size).mean(axis=-1).reshape(1, M)
    b_folded = b_folded.astype(jnp.float32)                    # (1, M)

    # --- Pad pooled feature dim to a lane multiple (lane-dense weight/acc/epilogue) ---
    M_pad = max(_LANES, pl.cdiv(M, _LANES) * _LANES)
    if M_pad != M:
        w_folded = jnp.pad(w_folded, ((0, 0), (0, M_pad - M)))
        b_folded = jnp.pad(b_folded, ((0, 0), (0, M_pad - M)))
    x = x.astype(jnp.float32)

    # --- Tile selection against an explicit VMEM budget (safe on v5e/v6e/v7x) ---
    VMEM_BUDGET = 8 << 20   # conservative: well under v5e's 16 MiB scoped default

    def vmem_bytes(tb, tk):
        # double-buffered x tile + double-buffered weight tile + acc + double-buffered out
        return 4 * (2 * tb * tk + 2 * tk * M_pad + tb * M_pad + 2 * tb * _LANES)

    def pick_tk(tb):
        # Prefer NOT splitting K at all (fewer grid steps, no accumulator round-trips).
        if vmem_bytes(tb, K) <= VMEM_BUDGET:
            return K
        for cand in (2048, 1024, 512, 256, 128):
            if K % cand == 0 and vmem_bytes(tb, cand) <= VMEM_BUDGET:
                return cand
        # TODO(synk): huge K with no aligned divisor would need BoundedSlice-style tiling.
        return K

    tb = 8
    for cand in (256, 128, 64, 32, 16, 8):
        if vmem_bytes(cand, pick_tk(cand)) <= VMEM_BUDGET:
            tb = cand
            break
    # v7x has 2 TensorCores: keep >= 2 blocks on the 'parallel' batch axis when possible.
    while tb > 8 and pl.cdiv(B, tb) < 2:
        tb //= 2
    tk = pick_tk(tb)
    nbk = K // tk if K % tk == 0 else 1
    if nbk == 1:
        tk = K

    # Pad batch up to a multiple of tb (padded rows are sliced off at the end).
    Bp = pl.cdiv(B, tb) * tb
    if Bp != B:
        x = jnp.pad(x, ((0, Bp - B), (0, 0)))
    nbb = Bp // tb

    cost = pl.CostEstimate(
        flops=2 * Bp * K * M_pad,
        transcendentals=Bp * M_pad,
        bytes_accessed=4 * (Bp * K + K * M_pad + M_pad + Bp * _LANES),
    )
    out_shape = jax.ShapeDtypeStruct((Bp, _LANES), jnp.float32)

    if nbk == 1:
        out = pl.pallas_call(
            _make_single_pass_kernel(scale_factor, M),
            out_shape=out_shape,
            grid=(nbb,),
            in_specs=[
                pl.BlockSpec((tb, K), lambda i: (i, 0)),       # x tile
                pl.BlockSpec((K, M_pad), lambda i: (0, 0)),    # folded weight (whole)
                pl.BlockSpec((1, M_pad), lambda i: (0, 0)),    # folded bias (tiny)
            ],
            out_specs=pl.BlockSpec((tb, _LANES), lambda i: (i, 0)),
            compiler_params=pltpu.CompilerParams(
                dimension_semantics=("parallel",)),
            cost_estimate=cost,
        )(x, w_folded, b_folded)
    else:
        out = pl.pallas_call(
            _make_ktiled_kernel(scale_factor, M),
            out_shape=out_shape,
            grid=(nbb, nbk),
            in_specs=[
                pl.BlockSpec((tb, tk), lambda i, k: (i, k)),     # x tile
                pl.BlockSpec((tk, M_pad), lambda i, k: (k, 0)),  # folded weight tile
                pl.BlockSpec((1, M_pad), lambda i, k: (0, 0)),   # folded bias (tiny)
            ],
            out_specs=pl.BlockSpec((tb, _LANES), lambda i, k: (i, 0)),
            scratch_shapes=[pltpu.VMEM((tb, M_pad), jnp.float32)],
            compiler_params=pltpu.CompilerParams(
                dimension_semantics=("parallel", "arbitrary")),
            cost_estimate=cost,
        )(x, w_folded, b_folded)

    return out[:B, 0]                                          # (B,)


def _reference(x, weight, bias, pool_kernel_size, scale_factor):
    """Pure-JAX reference mirroring the PyTorch module_fn."""
    y = x @ weight.T + bias
    B, N = y.shape
    pooled = y.reshape(B, N // pool_kernel_size, pool_kernel_size).mean(axis=-1)
    g = jax.nn.gelu(pooled, approximate=False)
    return jnp.max(g * scale_factor, axis=1)


if __name__ == "__main__":
    key = jax.random.PRNGKey(0)
    # Shapes consistent with the module spec (in_features=512, out_features=256).
    batch, in_features, out_features = 128, 512, 256
    pool_kernel_size, scale_factor = 4, 2.0

    kx, kw, kb = jax.random.split(key, 3)
    x = jax.random.normal(kx, (batch, in_features), dtype=jnp.float32)
    # Deterministic nn.Linear-style init: U(-1/sqrt(K), 1/sqrt(K))
    bound = 1.0 / math.sqrt(in_features)
    weight = jax.random.uniform(kw, (out_features, in_features),
                                minval=-bound, maxval=bound, dtype=jnp.float32)
    bias = jax.random.uniform(kb, (out_features,),
                              minval=-bound, maxval=bound, dtype=jnp.float32)

    out = matmul_avgpool_gelu_scale_max(x, weight, bias, pool_kernel_size, scale_factor)
    out = jax.block_until_ready(out)

    ref = _reference(x, weight, bias, pool_kernel_size, scale_factor)
    assert out.shape == (batch,)
    assert jnp.allclose(out, ref, atol=1e-4, rtol=1e-4), (out, ref)
    print("KERNEL_OK")
</pallas_src>

<mosaic_0001>
module attributes {stable_mosaic.version = 11 : i64} {
  func.func @kernel(%arg0: i32, %arg1: memref<64x512xf32, #tpu.memory_space<vmem>>, %arg2: memref<512x128xf32, #tpu.memory_space<vmem>>, %arg3: memref<1x128xf32, #tpu.memory_space<vmem>>, %arg4: memref<64x128xf32, #tpu.memory_space<vmem>>) attributes {dimension_semantics = [#tpu.dimension_semantics<parallel>], iteration_bounds = array<i64: 2>, scalar_prefetch = 0 : i64, scratch_operands = 0 : i64, tpu.core_type = #tpu.core_type<tc>, window_params = [{transform_indices = @transform_0, window_bounds = array<i64: 64, 512>}, {pipeline_mode = #tpu.pipeline_mode<synchronous>, transform_indices = @transform_1, window_bounds = array<i64: 512, 128>}, {pipeline_mode = #tpu.pipeline_mode<synchronous>, transform_indices = @transform_2, window_bounds = array<i64: 1, 128>}, {transform_indices = @transform_3, window_bounds = array<i64: 64, 128>}]} {
    %c0 = arith.constant 0 : index
    %c0_0 = arith.constant 0 : index
    %0 = vector.load %arg1[%c0, %c0_0] : memref<64x512xf32, #tpu.memory_space<vmem>>, vector<64x512xf32>
    %c0_1 = arith.constant 0 : index
    %c0_2 = arith.constant 0 : index
    %1 = vector.load %arg2[%c0_1, %c0_2] : memref<512x128xf32, #tpu.memory_space<vmem>>, vector<512x128xf32>
    %cst = arith.constant dense<0.000000e+00> : vector<64x128xf32>
    %2 = tpu.matmul %0, %1, %cst {dimension_numbers = #tpu.dot_dimension_numbers<[1], [0], [0], [1], [0, 0, 1, 1], [], []>} : vector<64x512xf32>, vector<512x128xf32>, vector<64x128xf32> -> vector<64x128xf32>
    %c0_3 = arith.constant 0 : index
    %c0_4 = arith.constant 0 : index
    %3 = vector.load %arg3[%c0_3, %c0_4] : memref<1x128xf32, #tpu.memory_space<vmem>>, vector<1x128xf32>
    %4 = vector.broadcast %3 : vector<1x128xf32> to vector<64x128xf32>
    %5 = arith.addf %2, %4 : vector<64x128xf32>
    %cst_5 = arith.constant 5.000000e-01 : f32
    %6 = vector.broadcast %cst_5 : f32 to vector<64x128xf32>
    %7 = arith.mulf %6, %5 : vector<64x128xf32>
    %cst_6 = arith.constant 0.707106769 : f32
    %8 = vector.broadcast %cst_6 : f32 to vector<64x128xf32>
    %9 = arith.mulf %5, %8 : vector<64x128xf32>
    %10 = math.erf %9 : vector<64x128xf32>
    %cst_7 = arith.constant 1.000000e+00 : f32
    %11 = vector.broadcast %cst_7 : f32 to vector<64x128xf32>
    %12 = arith.addf %11, %10 : vector<64x128xf32>
    %13 = arith.mulf %7, %12 : vector<64x128xf32>
    %cst_8 = arith.constant 2.000000e+00 : f32
    %14 = vector.broadcast %cst_8 : f32 to vector<64x128xf32>
    %15 = arith.mulf %13, %14 : vector<64x128xf32>
    %16 = tpu.iota {dimensions = array<i32: 1>} : vector<64x128xi32>
    %c64_i32 = arith.constant 64 : i32
    %17 = vector.broadcast %c64_i32 : i32 to vector<64x128xi32>
    %18 = arith.cmpi slt, %16, %17 : vector<64x128xi32>
    %cst_9 = arith.constant 0xFF800000 : f32
    %19 = vector.broadcast %cst_9 : f32 to vector<64x128xf32>
    %20 = arith.select %18, %15, %19 : vector<64x128xi1>, vector<64x128xf32>
    %cst_10 = arith.constant dense<0xFF800000> : vector<64xf32>
    %21 = vector.multi_reduction <maximumf>, %20, %cst_10 [1] : vector<64x128xf32> to vector<64xf32>
    %22 = vector.shape_cast %21 : vector<64xf32> to vector<64x1xf32>
    %23 = vector.shape_cast %22 : vector<64x1xf32> to vector<64x1xf32>
    %24 = vector.broadcast %23 : vector<64x1xf32> to vector<64x128xf32>
    %c0_11 = arith.constant 0 : index
    %c0_12 = arith.constant 0 : index
    %25 = vector.load %arg4[%c0_11, %c0_12] : memref<64x128xf32, #tpu.memory_space<vmem>>, vector<64x128xf32>
    tpu.vector_store %arg4[%c0_11, %c0_12], %24 {strides = array<i32>} : memref<64x128xf32, #tpu.memory_space<vmem>>, vector<64x128xf32>,
    return
  }
  func.func @transform_0(%arg0: i32) -> (i32, i32) {
    %c0_i32 = arith.constant 0 : i32
    %c0_i32_0 = arith.constant 0 : i32
    return %arg0, %c0_i32 : i32, i32
  }
  func.func @transform_1(%arg0: i32) -> (i32, i32) {
    %c0_i32 = arith.constant 0 : i32
    %c0_i32_0 = arith.constant 0 : i32
    %c0_i32_1 = arith.constant 0 : i32
    return %c0_i32, %c0_i32_0 : i32, i32
  }
  func.func @transform_2(%arg0: i32) -> (i32, i32) {
    %c0_i32 = arith.constant 0 : i32
    %c0_i32_0 = arith.constant 0 : i32
    %c0_i32_1 = arith.constant 0 : i32
    return %c0_i32, %c0_i32_0 : i32, i32
  }
  func.func @transform_3(%arg0: i32) -> (i32, i32) {
    %c0_i32 = arith.constant 0 : i32
    %c0_i32_0 = arith.constant 0 : i32
    return %arg0, %c0_i32 : i32, i32
  }
}

</mosaic_0001>

<llo_original>
// kernel: tpu_custom_call.1
$region0: #{tpu_custom_call.1}
  #allocation0 [shape = 'u32[]', space=smem, size = 0x4, offset = 0x4, fixed_abs, tag = 'smem constant byte address 0x4 - core index']
  #allocation1 [shape = 'u32[144,128]{1,0:T(1,128)}', space=vmem, size = 0x12000, scoped, tag = 'internal scratch']
  %s0 = inlined_call_operand.hbm [shape: f32[128,512], index: 0, kind: input, shape index: {}]
  %s1 = inlined_call_operand.hbm [shape: f32[512,128], index: 1, kind: input, shape index: {}]
  %s2 = inlined_call_operand.vmem [shape: f32[1,128], index: 2, kind: input, shape index: {}]
  %s3 = inlined_call_operand.hbm [shape: f32[128,128], index: 3, kind: output, shape index: {}]
  %s4 = sld [smem:[#allocation0]]
  $region53: #{tpu_custom_call.1} parent=0
    _
  %s6 = ssub.s32 1, %s4
  %s7 = scalar_select 0, %s6, %s4
  $region1: #{tpu_custom_call.1} parent=0
    #allocation2 [shape = 'u8[262144]{0}', space=vmem, size = 0x40000, scoped, tag = 'input window, operand 0']
    #allocation3 [shape = 's32[2]{0}', space=sflag, size = 0x8, scoped, tag = 'scoped memory for tpu_custom_call.1']
    #allocation4 [shape = 's32[2]{0}', space=sflag, size = 0x8, scoped, tag = 'scoped memory for tpu_custom_call.1']
    #allocation5 [shape = 'u8[262144]{0}', space=vmem, size = 0x40000, scoped, tag = 'input window, operand 1, single buffered']
    #allocation6 [shape = 's32[1]{0}', space=sflag, size = 0x4, scoped, tag = 'scoped memory for tpu_custom_call.1']
    #allocation7 [shape = 'u8[65536]{0}', space=vmem, size = 0x10000, scoped, tag = 'output window, operand 0']
    %8 = vsyncpa [#allocation3], 0
    %s9 = scalar_lea.sflag [#allocation3], 1
    %10 = vsyncpa %s9, 0
    %11 = vsyncpa [#allocation6], 0
    %12 = vsyncpa [#allocation4], 0
    %s13 = scalar_lea.sflag [#allocation4], 1
    %14 = vsyncpa %s13, 0
    loop: start=0, step=1, limit=4
    $region2: #{tpu_custom_call.1} parent=1 // loop_pre_header
      _
    $region3: #{tpu_custom_call.1} parent=1 // loop_header
      %s16 = sphi 0, %s20
      %p17 = scmp.ge.s32.totalorder %s16, 4
      %s26 = sphi 0, %s28
      %s29 = sphi 0, %s26
      %s30 = sphi 0, %s29
      %s46 = sphi 0, %s30
      %s50 = sphi 0, %s50
      %s52 = sphi 0, %s50
      %s53 = sphi 0, %s52
      %s67 = sphi 0, %s53
      %s71 = sphi 0, %s71
      %s73 = sphi 0, %s71
      %s74 = sphi 0, %s73
      %s88 = sphi 0, %s74
      %s94 = sphi 0, %s96
      %s97 = sphi 0, %s94
      %s98 = sphi 0, %s97
      %s114 = sphi 0, %s98
    $region4: #{tpu_custom_call.1} parent=1 // loop_header_branch
      %19 = sbr.rel (%p17) target = $region8
    $region5: #{tpu_custom_call.1} parent=1 // loop_body
      %s21 = ssub.s32 %s16, 1
      %s22 = ssub.s32 %s16, 2
      %s23 = sadd.s32 %s16, 1
      %s24 = ssub.s32 %s16, %s23
      %p25 = scmp.eq.s32.totalorder %s24, 0
      %s27 = sadd.s32 %s26, 1
      %s28 = scalar_select %p25, %s26, %s27
      %p31 = pneg %p25
      %p32 = scmp.eq.s32.totalorder %s16, 1
      %p33 = por %p31, %p32
      %p34 = scmp.ne.s32.totalorder %s26, %s29
      %p35 = scmp.eq.s32.totalorder %s16, 0
      %p36 = por %p34, %p35
      %p37 = scmp.ne.s32.totalorder %s26, %s29
      %p38 = scmp.eq.s32.totalorder %s21, 1
      %p39 = por %p37, %p38
      %p40 = scmp.ne.s32.totalorder %s29, %s30
      %p41 = scmp.eq.s32.totalorder %s21, 0
      %p42 = por %p40, %p41
      %p43 = scmp.ne.s32.totalorder %s29, %s30
      %p44 = scmp.eq.s32.totalorder %s22, 1
      %p45 = por %p43, %p44
      %p47 = scmp.ne.s32.totalorder %s30, %s46
      %p48 = scmp.eq.s32.totalorder %s22, 0
      %p49 = por %p47, %p48
      %s51 = sadd.s32 %s50, 1
      %p54 = scmp.eq.s32.totalorder %s16, 1
      %p55 = scmp.ne.s32.totalorder %s50, %s52
      %p56 = scmp.eq.s32.totalorder %s16, 0
      %p57 = por %p55, %p56
      %p58 = scmp.ne.s32.totalorder %s50, %s52
      %p59 = scmp.eq.s32.totalorder %s21, 1
      %p60 = por %p58, %p59
      %p61 = scmp.ne.s32.totalorder %s52, %s53
      %p62 = scmp.eq.s32.totalorder %s21, 0
      %p63 = por %p61, %p62
      %p64 = scmp.ne.s32.totalorder %s52, %s53
      %p65 = scmp.eq.s32.totalorder %s22, 1
      %p66 = por %p64, %p65
      %p68 = scmp.ne.s32.totalorder %s53, %s67
      %p69 = scmp.eq.s32.totalorder %s22, 0
      %p70 = por %p68, %p69
      %s72 = sadd.s32 %s71, 1
      %p75 = scmp.eq.s32.totalorder %s16, 1
      %p76 = scmp.ne.s32.totalorder %s71, %s73
      %p77 = scmp.eq.s32.totalorder %s16, 0
      %p78 = por %p76, %p77
      %p79 = scmp.ne.s32.totalorder %s71, %s73
      %p80 = scmp.eq.s32.totalorder %s21, 1
      %p81 = por %p79, %p80
      %p82 = scmp.ne.s32.totalorder %s73, %s74
      %p83 = scmp.eq.s32.totalorder %s21, 0
      %p84 = por %p82, %p83
      %p85 = scmp.ne.s32.totalorder %s73, %s74
      %p86 = scmp.eq.s32.totalorder %s22, 1
      %p87 = por %p85, %p86
      %p89 = scmp.ne.s32.totalorder %s74, %s88
      %p90 = scmp.eq.s32.totalorder %s22, 0
      %p91 = por %p89, %p90
      %s92 = ssub.s32 %s16, %s23
      %p93 = scmp.eq.s32.totalorder %s92, 0
      %s95 = sadd.s32 %s94, 1
      %s96 = scalar_select %p93, %s94, %s95
      %p99 = pneg %p93
      %p100 = scmp.eq.s32.totalorder %s16, 1
      %p101 = por %p99, %p100
      %p102 = scmp.ne.s32.totalorder %s94, %s97
      %p103 = scmp.eq.s32.totalorder %s16, 0
      %p104 = por %p102, %p103
      %p105 = scmp.ne.s32.totalorder %s94, %s97
      %p106 = scmp.eq.s32.totalorder %s21, 1
      %p107 = por %p105, %p106
      %p108 = scmp.ne.s32.totalorder %s97, %s98
      %p109 = scmp.eq.s32.totalorder %s21, 0
      %p110 = por %p108, %p109
      %p111 = scmp.ne.s32.totalorder %s97, %s98
      %p112 = scmp.eq.s32.totalorder %s22, 1
      %p113 = por %p111, %p112
      %p115 = scmp.ne.s32.totalorder %s98, %s114
      %p116 = scmp.eq.s32.totalorder %s22, 0
      %p117 = por %p115, %p116
      %p118 = scmp.le.s32.totalorder 1, %s16
      %p119 = scmp.lt.s32.totalorder %s16, 3
      %p120 = pnand %p118, %p119
      %p121 = pneg %p120
      // Predicated region
      $region9: #{tpu_custom_call.1} parent=5 // pred_check
        _
      $region10: #{tpu_custom_call.1} parent=5 // pred_check_branch
        %123 = sbr.rel (%p120) target = $region12
      $region11: #{tpu_custom_call.1} parent=5 // pred_region
        %s124 = ssub.s32 %s16, 1
        // Predicated region
        $region13: #{tpu_custom_call.1} parent=11 // pred_check
          %p125 = pneg %p63
        $region14: #{tpu_custom_call.1} parent=11 // pred_check_branch
          %127 = sbr.rel (%p125) target = $region16
        $region15: #{tpu_custom_call.1} parent=11 // pred_region
          %s129 = ssub.s32 8192, 8192
          %130 = vsyncadd [#allocation6], %s129
          %s131 = sshll.u32 [#allocation5], 4
          %s132 = int_to_ptr.vmem [resolvable:$true] %s131
          %137 = dma.hbm_to_vmem [thread:$0]  %s1, 8192, %s132, [#allocation6], 128, 128, 8
        $region16: #{tpu_custom_call.1} parent=11 // pred_fallthru
          _
        // Predicated region
        $region17: #{tpu_custom_call.1} parent=11 // pred_check
          %p138 = pneg %p84
        $region18: #{tpu_custom_call.1} parent=11 // pred_check_branch
          %140 = sbr.rel (%p138) target = $region20
        $region19: #{tpu_custom_call.1} parent=11 // pred_region
          _
        $region20: #{tpu_custom_call.1} parent=11 // pred_fallthru
          _
      $region12: #{tpu_custom_call.1} parent=5 // pred_fallthru
        _
      %p141 = scmp.lt.s32.totalorder %s16, 2
      // Predicated region
      $region21: #{tpu_custom_call.1} parent=5 // pred_check
        %p142 = pneg %p141
      $region22: #{tpu_custom_call.1} parent=5 // pred_check_branch
        %144 = sbr.rel (%p142) target = $region24
      $region23: #{tpu_custom_call.1} parent=5 // pred_region
        // Predicated region
        $region25: #{tpu_custom_call.1} parent=23 // pred_check
          %p145 = pneg %p36
        $region26: #{tpu_custom_call.1} parent=23 // pred_check_branch
          %147 = sbr.rel (%p145) target = $region28
        $region27: #{tpu_custom_call.1} parent=23 // pred_region
          %s148 = sand.u32 %s26, 1
          %s149 = scalar_lea.sflag [#allocation3], %s148
          %s150 = sand.u32 %s26, 1
          %s151 = smul.addr %s150, 256
          %s152 = scalar_lea.vmem [#allocation2], %s151
          %s153 = smul.u32 8, %s16
          %s155 = ssub.s32 4096, 4096
          %156 = vsyncadd %s149, %s155
          %s157 = smul.addr %s153, 4
          %s158 = smul.addr %s157, 128
          %s159 = scalar_lea.hbm %s0, %s158
          %s160 = sshll.u32 %s152, 4
          %s161 = int_to_ptr.vmem [resolvable:$true] %s160
          %166 = dma.hbm_to_vmem [thread:$0]  %s159, 4096, %s161, %s149, 512, 512, 32
        $region28: #{tpu_custom_call.1} parent=23 // pred_fallthru
          _
      $region24: #{tpu_custom_call.1} parent=5 // pred_fallthru
        _
      %p167 = scmp.le.s32.totalorder 1, %s16
      %p168 = scmp.lt.s32.totalorder %s16, 3
      %p169 = pnand %p167, %p168
      %p170 = pneg %p169
      // Predicated region
      $region29: #{tpu_custom_call.1} parent=5 // pred_check
        _
      $region30: #{tpu_custom_call.1} parent=5 // pred_check_branch
        %172 = sbr.rel (%p169) target = $region32
      $region31: #{tpu_custom_call.1} parent=5 // pred_region
        %s173 = ssub.s32 %s16, 1
        %s174 = sand.u32 %s29, 1
        %s175 = scalar_lea.sflag [#allocation3], %s174
        %s176 = sand.u32 %s29, 1
        %s177 = smul.addr %s176, 256
        %s178 = scalar_lea.vmem [#allocation2], %s177
        // Predicated region
        $region33: #{tpu_custom_call.1} parent=31 // pred_check
          %p179 = pneg %p42
        $region34: #{tpu_custom_call.1} parent=31 // pred_check_branch
          %181 = sbr.rel (%p179) target = $region36
        $region35: #{tpu_custom_call.1} parent=31 // pred_region
          %182 = dma.done %s175, 4096
        $region36: #{tpu_custom_call.1} parent=31 // pred_fallthru
          _
        // Predicated region
        $region37: #{tpu_custom_call.1} parent=31 // pred_check
          %p183 = pneg %p63
        $region38: #{tpu_custom_call.1} parent=31 // pred_check_branch
          %185 = sbr.rel (%p183) target = $region40
        $region39: #{tpu_custom_call.1} parent=31 // pred_region
          %186 = dma.done [#allocation6], 8192
        $region40: #{tpu_custom_call.1} parent=31 // pred_fallthru
          _
        %s187 = sand.u32 %s29, 1
        %s188 = scalar_lea.sflag [#allocation3], %s187
        %s189 = sand.u32 %s29, 1
        %s190 = smul.addr %s189, 256
        %s191 = scalar_lea.vmem [#allocation2], %s190
        %p192 = pneg %p42
        %p193 = pneg %p39
        %p194 = pneg %p63
        %p195 = pneg %p60
        %p196 = pneg %p84
        %p197 = pneg %p81
        %p198 = pneg %p110
        %p199 = pneg %p107
        %s200 = sand.u32 %s97, 1
        %s201 = scalar_lea.sflag [#allocation4], %s200
        %s202 = sand.u32 %s97, 1
        %s203 = smul.addr %s202, 64
        %s204 = scalar_lea.vmem [#allocation7], %s203
        %s205 = smul.u32 8, %s21
        %s206 = smul.u32 8, %s21
        %v207 = vld [vmem:[%s178] sm:$0xff]
        %v208 = vld [vmem:[%s178 + $0x8] sm:$0xff]
        %v209 = vld [vmem:[%s178 + $0x10] sm:$0xff]
        %v210 = vld [vmem:[%s178 + $0x18] sm:$0xff]
        %v211 = vld [vmem:[%s178 + $0x20] sm:$0xff]
        %v212 = vld [vmem:[%s178 + $0x28] sm:$0xff]
        %v213 = vld [vmem:[%s178 + $0x30] sm:$0xff]
        %v214 = vld [vmem:[%s178 + $0x38] sm:$0xff]
        %v215 = vld [vmem:[%s178 + $0x40] sm:$0xff]
        %v216 = vld [vmem:[%s178 + $0x48] sm:$0xff]
        %v217 = vld [vmem:[%s178 + $0x50] sm:$0xff]
        %v218 = vld [vmem:[%s178 + $0x58] sm:$0xff]
        %v219 = vld [vmem:[%s178 + $0x60] sm:$0xff]
        %v220 = vld [vmem:[%s178 + $0x68] sm:$0xff]
        %v221 = vld [vmem:[%s178 + $0x70] sm:$0xff]
        %v222 = vld [vmem:[%s178 + $0x78] sm:$0xff]
        %v223 = vld [vmem:[%s178 + $0x80] sm:$0xff]
        %v224 = vld [vmem:[%s178 + $0x88] sm:$0xff]
        %v225 = vld [vmem:[%s178 + $0x90] sm:$0xff]
        %v226 = vld [vmem:[%s178 + $0x98] sm:$0xff]
        %v227 = vld [vmem:[%s178 + $0xa0] sm:$0xff]
        %v228 = vld [vmem:[%s178 + $0xa8] sm:$0xff]
        %v229 = vld [vmem:[%s178 + $0xb0] sm:$0xff]
        %v230 = vld [vmem:[%s178 + $0xb8] sm:$0xff]
        %v231 = vld [vmem:[%s178 + $0xc0] sm:$0xff]
        %v232 = vld [vmem:[%s178 + $0xc8] sm:$0xff]
        %v233 = vld [vmem:[%s178 + $0xd0] sm:$0xff]
        %v234 = vld [vmem:[%s178 + $0xd8] sm:$0xff]
        %v235 = vld [vmem:[%s178 + $0xe0] sm:$0xff]
        %v236 = vld [vmem:[%s178 + $0xe8] sm:$0xff]
        %v237 = vld [vmem:[%s178 + $0xf0] sm:$0xff]
        %v238 = vld [vmem:[%s178 + $0xf8] sm:$0xff]
        %v239 = vld [vmem:[#allocation5] sm:$0xff]
        %v240 = vld [vmem:[#allocation5 + $0x8] sm:$0xff]
        %v241 = vld [vmem:[#allocation5 + $0x10] sm:$0xff]
        %v242 = vld [vmem:[#allocation5 + $0x18] sm:$0xff]
        %v243 = vld [vmem:[#allocation5 + $0x20] sm:$0xff]
        %v244 = vld [vmem:[#allocation5 + $0x28] sm:$0xff]
        %v245 = vld [vmem:[#allocation5 + $0x30] sm:$0xff]
        %v246 = vld [vmem:[#allocation5 + $0x38] sm:$0xff]
        %v247 = vld [vmem:[#allocation5 + $0x40] sm:$0xff]
        %v248 = vld [vmem:[#allocation5 + $0x48] sm:$0xff]
        %v249 = vld [vmem:[#allocation5 + $0x50] sm:$0xff]
        %v250 = vld [vmem:[#allocation5 + $0x58] sm:$0xff]
        %v251 = vld [vmem:[#allocation5 + $0x60] sm:$0xff]
        %v252 = vld [vmem:[#allocation5 + $0x68] sm:$0xff]
        %v253 = vld [vmem:[#allocation5 + $0x70] sm:$0xff]
        %v254 = vld [vmem:[#allocation5 + $0x78] sm:$0xff]
        %v255 = vld [vmem:[#allocation5 + $0x80] sm:$0xff]
        %v256 = vld [vmem:[#allocation5 + $0x88] sm:$0xff]
        %v257 = vld [vmem:[#allocation5 + $0x90] sm:$0xff]
        %v258 = vld [vmem:[#allocation5 + $0x98] sm:$0xff]
        %v259 = vld [vmem:[#allocation5 + $0xa0] sm:$0xff]
        %v260 = vld [vmem:[#allocation5 + $0xa8] sm:$0xff]
        %v261 = vld [vmem:[#allocation5 + $0xb0] sm:$0xff]
        %v262 = vld [vmem:[#allocation5 + $0xb8] sm:$0xff]
        %v263 = vld [vmem:[#allocation5 + $0xc0] sm:$0xff]
        %v264 = vld [vmem:[#allocation5 + $0xc8] sm:$0xff]
        %v265 = vld [vmem:[#allocation5 + $0xd0] sm:$0xff]
        %v266 = vld [vmem:[#allocation5 + $0xd8] sm:$0xff]
        %v267 = vld [vmem:[#allocation5 + $0xe0] sm:$0xff]
        %v268 = vld [vmem:[#allocation5 + $0xe8] sm:$0xff]
        %v269 = vld [vmem:[#allocation5 + $0xf0] sm:$0xff]
        %v270 = vld [vmem:[#allocation5 + $0xf8] sm:$0xff]
        %v271 = vld [vmem:[#allocation5 + $0x100] sm:$0xff]
        %v272 = vld [vmem:[#allocation5 + $0x108] sm:$0xff]
        %v273 = vld [vmem:[#allocation5 + $0x110] sm:$0xff]
        %v274 = vld [vmem:[#allocation5 + $0x118] sm:$0xff]
        %v275 = vld [vmem:[#allocation5 + $0x120] sm:$0xff]
        %v276 = vld [vmem:[#allocation5 + $0x128] sm:$0xff]
        %v277 = vld [vmem:[#allocation5 + $0x130] sm:$0xff]
        %v278 = vld [vmem:[#allocation5 + $0x138] sm:$0xff]
        %v279 = vld [vmem:[#allocation5 + $0x140] sm:$0xff]
        %v280 = vld [vmem:[#allocation5 + $0x148] sm:$0xff]
        %v281 = vld [vmem:[#allocation5 + $0x150] sm:$0xff]
        %v282 = vld [vmem:[#allocation5 + $0x158] sm:$0xff]
        %v283 = vld [vmem:[#allocation5 + $0x160] sm:$0xff]
        %v284 = vld [vmem:[#allocation5 + $0x168] sm:$0xff]
        %v285 = vld [vmem:[#allocation5 + $0x170] sm:$0xff]
        %v286 = vld [vmem:[#allocation5 + $0x178] sm:$0xff]
        %v287 = vld [vmem:[#allocation5 + $0x180] sm:$0xff]
        %v288 = vld [vmem:[#allocation5 + $0x188] sm:$0xff]
        %v289 = vld [vmem:[#allocation5 + $0x190] sm:$0xff]
        %v290 = vld [vmem:[#allocation5 + $0x198] sm:$0xff]
        %v291 = vld [vmem:[#allocation5 + $0x1a0] sm:$0xff]
        %v292 = vld [vmem:[#allocation5 + $0x1a8] sm:$0xff]
        %v293 = vld [vmem:[#allocation5 + $0x1b0] sm:$0xff]
        %v294 = vld [vmem:[#allocation5 + $0x1b8] sm:$0xff]
        %v295 = vld [vmem:[#allocation5 + $0x1c0] sm:$0xff]
        %v296 = vld [vmem:[#allocation5 + $0x1c8] sm:$0xff]
        %v297 = vld [vmem:[#allocation5 + $0x1d0] sm:$0xff]
        %v298 = vld [vmem:[#allocation5 + $0x1d8] sm:$0xff]
        %v299 = vld [vmem:[#allocation5 + $0x1e0] sm:$0xff]
        %v300 = vld [vmem:[#allocation5 + $0x1e8] sm:$0xff]
        %v301 = vld [vmem:[#allocation5 + $0x1f0] sm:$0xff]
        %v302 = vld [vmem:[#allocation5 + $0x1f8] sm:$0xff]
        %v303 = vld [vmem:[%s2] sm:$0x1]
        %v305 = vlaneseq
        %v306 = vshrl.u32 %v305, 7
        %v307 = vsub.s32 0, %v306
        %v308 = vrot.slane %v303, %v307
        %310 = vmatprep.subr.mxu0 0.0
        %311 = vmatpush1.msra.mxu0 %v254
        %312 = vmatprep.subr.mxu0 0.0
        %313 = vmatpush1.msra.mxu0 %v253
        %314 = vmatprep.subr.mxu0 0.0
        %315 = vmatpush1.msra.mxu0 %v252
        %316 = vmatprep.subr.mxu0 0.0
        %317 = vmatpush1.msra.mxu0 %v251
        %318 = vmatprep.subr.mxu0 0.0
        %319 = vmatpush1.msra.mxu0 %v250
        %320 = vmatprep.subr.mxu0 0.0
        %321 = vmatpush1.msra.mxu0 %v249
        %322 = vmatprep.subr.mxu0 0.0
        %323 = vmatpush1.msra.mxu0 %v248
        %324 = vmatprep.subr.mxu0 0.0
        %325 = vmatpush1.msra.mxu0 %v247
        %326 = vmatprep.subr.mxu0 0.0
        %327 = vmatpush1.msra.mxu0 %v246
        %328 = vmatprep.subr.mxu0 0.0
        %329 = vmatpush1.msra.mxu0 %v245
        %330 = vmatprep.subr.mxu0 0.0
        %331 = vmatpush1.msra.mxu0 %v244
        %332 = vmatprep.subr.mxu0 0.0
        %333 = vmatpush1.msra.mxu0 %v243
        %334 = vmatprep.subr.mxu0 0.0
        %335 = vmatpush1.msra.mxu0 %v242
        %336 = vmatprep.subr.mxu0 0.0
        %337 = vmatpush1.msra.mxu0 %v241
        %338 = vmatprep.subr.mxu0 0.0
        %339 = vmatpush1.msra.mxu0 %v240
        %340 = vmatprep.subr.mxu0 0.0
        %341 = vmatpush1.msra.mxu0 %v239
        %342 = vmatprep.subr.mxu0 0.0
        %343 = vmatpush2.msra.mxu0 %v270
        %344 = vmatprep.subr.mxu0 0.0
        %345 = vmatpush2.msra.mxu0 %v269
        %346 = vmatprep.subr.mxu0 0.0
        %347 = vmatpush2.msra.mxu0 %v268
        %348 = vmatprep.subr.mxu0 0.0
        %349 = vmatpush2.msra.mxu0 %v267
        %350 = vmatprep.subr.mxu0 0.0
        %351 = vmatpush2.msra.mxu0 %v266
        %352 = vmatprep.subr.mxu0 0.0
        %353 = vmatpush2.msra.mxu0 %v265
        %354 = vmatprep.subr.mxu0 0.0
        %355 = vmatpush2.msra.mxu0 %v264
        %356 = vmatprep.subr.mxu0 0.0
        %357 = vmatpush2.msra.mxu0 %v263
        %358 = vmatprep.subr.mxu0 0.0
        %359 = vmatpush2.msra.mxu0 %v262
        %360 = vmatprep.subr.mxu0 0.0
        %361 = vmatpush2.msra.mxu0 %v261
        %362 = vmatprep.subr.mxu0 0.0
        %363 = vmatpush2.msra.mxu0 %v260
        %364 = vmatprep.subr.mxu0 0.0
        %365 = vmatpush2.msra.mxu0 %v259
        %366 = vmatprep.subr.mxu0 0.0
        %367 = vmatpush2.msra.mxu0 %v258
        %368 = vmatprep.subr.mxu0 0.0
        %369 = vmatpush2.msra.mxu0 %v257
        %370 = vmatprep.subr.mxu0 0.0
        %371 = vmatpush2.msra.mxu0 %v256
        %372 = vmatprep.subr.mxu0 0.0
        %373 = vmatpush2.msra.mxu0 %v255
        %374 = vmatprep.mubr.f32.mxu0 %v208
        %375 = vmatmul.mubr.f32.gmra.mxu0 %v207
        %v376 = vpop.f32.mrf.mxu0
        %v377 = vadd.f32 %v308, %v376
        %v378 = vpop.f32.mrf.mxu0
        %379 = vmatprep.mubr.f32.mxu0 %v212
        %380 = vmatmul.mubr.f32.gmra.mxu0 %v211
        %v381 = vpop.f32.mrf.mxu0
        %v382 = vadd.f32 %v308, %v381
        %v383 = vpop.f32.mrf.mxu0
        %384 = vmatprep.mubr.f32.mxu0 %v216
        %385 = vmatmul.mubr.f32.gmra.mxu0 %v215
        %v386 = vpop.f32.mrf.mxu0
        %v387 = vadd.f32 %v308, %v386
        %v388 = vpop.f32.mrf.mxu0
        %389 = vmatprep.mubr.f32.mxu0 %v220
        %390 = vmatmul.mubr.f32.gmra.mxu0 %v219
        %v391 = vpop.f32.mrf.mxu0
        %v392 = vadd.f32 %v308, %v391
        %v393 = vpop.f32.mrf.mxu0
        %394 = vmatprep.mubr.f32.mxu0 %v224
        %395 = vmatmul.mubr.f32.gmra.mxu0 %v223
        %v396 = vpop.f32.mrf.mxu0
        %v397 = vadd.f32 %v308, %v396
        %v398 = vpop.f32.mrf.mxu0
        %399 = vmatprep.mubr.f32.mxu0 %v228
        %400 = vmatmul.mubr.f32.gmra.mxu0 %v227
        %v401 = vpop.f32.mrf.mxu0
        %v402 = vadd.f32 %v308, %v401
        %v403 = vpop.f32.mrf.mxu0
        %404 = vmatprep.mubr.f32.mxu0 %v232
        %405 = vmatmul.mubr.f32.gmra.mxu0 %v231
        %v406 = vpop.f32.mrf.mxu0
        %v407 = vadd.f32 %v308, %v406
        %v408 = vpop.f32.mrf.mxu0
        %409 = vmatprep.mubr.f32.mxu0 %v236
        %410 = vmatmul.mubr.f32.gmra.mxu0 %v235
        %v411 = vpop.f32.mrf.mxu0
        %v412 = vadd.f32 %v308, %v411
        %v413 = vpop.f32.mrf.mxu0
        %414 = vdwg.mxu0
        %415 = vmatprep.subr.mxu0 0.0
        %416 = vmatpush1.msra.mxu0 %v286
        %417 = vmatprep.subr.mxu0 0.0
        %418 = vmatpush1.msra.mxu0 %v285
        %419 = vmatprep.subr.mxu0 0.0
        %420 = vmatpush1.msra.mxu0 %v284
        %421 = vmatprep.subr.mxu0 0.0
        %422 = vmatpush1.msra.mxu0 %v283
        %423 = vmatprep.subr.mxu0 0.0
        %424 = vmatpush1.msra.mxu0 %v282
        %425 = vmatprep.subr.mxu0 0.0
        %426 = vmatpush1.msra.mxu0 %v281
        %427 = vmatprep.subr.mxu0 0.0
        %428 = vmatpush1.msra.mxu0 %v280
        %429 = vmatprep.subr.mxu0 0.0
        %430 = vmatpush1.msra.mxu0 %v279
        %431 = vmatprep.subr.mxu0 0.0
        %432 = vmatpush1.msra.mxu0 %v278
        %433 = vmatprep.subr.mxu0 0.0
        %434 = vmatpush1.msra.mxu0 %v277
        %435 = vmatprep.subr.mxu0 0.0
        %436 = vmatpush1.msra.mxu0 %v276
        %437 = vmatprep.subr.mxu0 0.0
        %438 = vmatpush1.msra.mxu0 %v275
        %439 = vmatprep.subr.mxu0 0.0
        %440 = vmatpush1.msra.mxu0 %v274
        %441 = vmatprep.subr.mxu0 0.0
        %442 = vmatpush1.msra.mxu0 %v273
        %443 = vmatprep.subr.mxu0 0.0
        %444 = vmatpush1.msra.mxu0 %v272
        %445 = vmatprep.subr.mxu0 0.0
        %446 = vmatpush1.msra.mxu0 %v271
        %447 = vmatprep.subr.mxu0 0.0
        %448 = vmatpush2.msra.mxu0 %v302
        %449 = vmatprep.subr.mxu0 0.0
        %450 = vmatpush2.msra.mxu0 %v301
        %451 = vmatprep.subr.mxu0 0.0
        %452 = vmatpush2.msra.mxu0 %v300
        %453 = vmatprep.subr.mxu0 0.0
        %454 = vmatpush2.msra.mxu0 %v299
        %455 = vmatprep.subr.mxu0 0.0
        %456 = vmatpush2.msra.mxu0 %v298
        %457 = vmatprep.subr.mxu0 0.0
        %458 = vmatpush2.msra.mxu0 %v297
        %459 = vmatprep.subr.mxu0 0.0
        %460 = vmatpush2.msra.mxu0 %v296
        %461 = vmatprep.subr.mxu0 0.0
        %462 = vmatpush2.msra.mxu0 %v295
        %463 = vmatprep.subr.mxu0 0.0
        %464 = vmatpush2.msra.mxu0 %v294
        %465 = vmatprep.subr.mxu0 0.0
        %466 = vmatpush2.msra.mxu0 %v293
        %467 = vmatprep.subr.mxu0 0.0
        %468 = vmatpush2.msra.mxu0 %v292
        %469 = vmatprep.subr.mxu0 0.0
        %470 = vmatpush2.msra.mxu0 %v291
        %471 = vmatprep.subr.mxu0 0.0
        %472 = vmatpush2.msra.mxu0 %v290
        %473 = vmatprep.subr.mxu0 0.0
        %474 = vmatpush2.msra.mxu0 %v289
        %475 = vmatprep.subr.mxu0 0.0
        %476 = vmatpush2.msra.mxu0 %v288
        %477 = vmatprep.subr.mxu0 0.0
        %478 = vmatpush2.msra.mxu0 %v287
        %479 = vmatprep.mubr.f32.mxu0 %v210
        %480 = vmatmul.mubr.f32.gmra.mxu0 %v209
        %v481 = vpop.f32.mrf.mxu0
        %v482 = vadd.f32 %v377, %v481
        %v483 = vpop.f32.mrf.mxu0
        %484 = vmatprep.mubr.f32.mxu0 %v214
        %485 = vmatmul.mubr.f32.gmra.mxu0 %v213
        %v486 = vpop.f32.mrf.mxu0
        %v487 = vadd.f32 %v382, %v486
        %v488 = vpop.f32.mrf.mxu0
        %489 = vmatprep.mubr.f32.mxu0 %v218
        %490 = vmatmul.mubr.f32.gmra.mxu0 %v217
        %v491 = vpop.f32.mrf.mxu0
        %v492 = vadd.f32 %v387, %v491
        %v493 = vpop.f32.mrf.mxu0
        %494 = vmatprep.mubr.f32.mxu0 %v222
        %495 = vmatmul.mubr.f32.gmra.mxu0 %v221
        %v496 = vpop.f32.mrf.mxu0
        %v497 = vadd.f32 %v392, %v496
        %v498 = vpop.f32.mrf.mxu0
        %499 = vmatprep.mubr.f32.mxu0 %v226
        %500 = vmatmul.mubr.f32.gmra.mxu0 %v225
        %v501 = vpop.f32.mrf.mxu0
        %v502 = vadd.f32 %v397, %v501
        %v503 = vpop.f32.mrf.mxu0
        %504 = vmatprep.mubr.f32.mxu0 %v230
        %505 = vmatmul.mubr.f32.gmra.mxu0 %v229
        %v506 = vpop.f32.mrf.mxu0
        %v507 = vadd.f32 %v402, %v506
        %v508 = vpop.f32.mrf.mxu0
        %509 = vmatprep.mubr.f32.mxu0 %v234
        %510 = vmatmul.mubr.f32.gmra.mxu0 %v233
        %v511 = vpop.f32.mrf.mxu0
        %v512 = vadd.f32 %v407, %v511
        %v513 = vpop.f32.mrf.mxu0
        %514 = vmatprep.mubr.f32.mxu0 %v238
        %515 = vmatmul.mubr.f32.gmra.mxu0 %v237
        %v516 = vpop.f32.mrf.mxu0
        %v517 = vadd.f32 %v412, %v516
        %v518 = vpop.f32.mrf.mxu0
        %519 = vdwg.mxu0
        %v520 = vmul.f32 %v482, 0.5
        %v521 = vmul.f32 %v487, 0.5
        %v522 = vmul.f32 %v492, 0.5
        %v523 = vmul.f32 %v497, 0.5
        %v524 = vmul.f32 %v502, 0.5
        %v525 = vmul.f32 %v507, 0.5
        %v526 = vmul.f32 %v512, 0.5
        %v527 = vmul.f32 %v517, 0.5
        %v528 = vmul.f32 %v482, 0.70710677
        %v529 = vmul.f32 %v487, 0.70710677
        %v530 = vmul.f32 %v492, 0.70710677
        %v531 = vmul.f32 %v497, 0.70710677
        %v532 = vmul.f32 %v502, 0.70710677
        %v533 = vmul.f32 %v507, 0.70710677
        %v534 = vmul.f32 %v512, 0.70710677
        %v535 = vmul.f32 %v517, 0.70710677
        %v536 = verf.f32.pop %v528
        %v537 = verf.f32.pop %v529
        %v538 = verf.f32.pop %v530
        %v539 = verf.f32.pop %v531
        %v540 = verf.f32.pop %v532
        %v541 = verf.f32.pop %v533
        %v542 = verf.f32.pop %v534
        %v543 = verf.f32.pop %v535
        %v544 = vadd.f32 %v536, 1.0
        %v545 = vadd.f32 %v537, 1.0
        %v546 = vadd.f32 %v538, 1.0
        %v547 = vadd.f32 %v539, 1.0
        %v548 = vadd.f32 %v540, 1.0
        %v549 = vadd.f32 %v541, 1.0
        %v550 = vadd.f32 %v542, 1.0
        %v551 = vadd.f32 %v543, 1.0
        %v552 = vmul.f32 %v520, %v544
        %v553 = vmul.f32 %v521, %v545
        %v554 = vmul.f32 %v522, %v546
        %v555 = vmul.f32 %v523, %v547
        %v556 = vmul.f32 %v524, %v548
        %v557 = vmul.f32 %v525, %v549
        %v558 = vmul.f32 %v526, %v550
        %v559 = vmul.f32 %v527, %v551
        %v560 = vmul.f32 %v552, 2.0
        %v561 = vmul.f32 %v553, 2.0
        %v562 = vmul.f32 %v554, 2.0
        %v563 = vmul.f32 %v555, 2.0
        %v564 = vmul.f32 %v556, 2.0
        %v565 = vmul.f32 %v557, 2.0
        %v566 = vmul.f32 %v558, 2.0
        %v567 = vmul.f32 %v559, 2.0
        %v568 = vlaneseq
        %v569 = vand.u32 %v568, 127
        %vm570 = vcmp.lt.s32.totalorder %v569, 64
        %v571 = vsel %vm570, %v560, -inf
        %v572 = vsel %vm570, %v561, -inf
        %v573 = vsel %vm570, %v562, -inf
        %v574 = vsel %vm570, %v563, -inf
        %v575 = vsel %vm570, %v564, -inf
        %v576 = vsel %vm570, %v565, -inf
        %v577 = vsel %vm570, %v566, -inf
        %v578 = vsel %vm570, %v567, -inf
        %579 = vmax.xlane.f32.xlu0 %v571
        %v580 = vpop.xlane.xlu0 %579
        %581 = vmax.xlane.f32.xlu0 %v572
        %v582 = vpop.xlane.xlu0 %581
        %583 = vmax.xlane.f32.xlu0 %v573
        %v584 = vpop.xlane.xlu0 %583
        %585 = vmax.xlane.f32.xlu0 %v574
        %v586 = vpop.xlane.xlu0 %585
        %587 = vmax.xlane.f32.xlu0 %v575
        %v588 = vpop.xlane.xlu0 %587
        %589 = vmax.xlane.f32.xlu0 %v576
        %v590 = vpop.xlane.xlu0 %589
        %591 = vmax.xlane.f32.xlu0 %v577
        %v592 = vpop.xlane.xlu0 %591
        %593 = vmax.xlane.f32.xlu0 %v578
        %v594 = vpop.xlane.xlu0 %593
        %595 = vst [vmem:[%s204] sm:$0xff] %v580
        %596 = vst [vmem:[%s204 + $0x8] sm:$0xff] %v582
        %597 = vst [vmem:[%s204 + $0x10] sm:$0xff] %v584
        %598 = vst [vmem:[%s204 + $0x18] sm:$0xff] %v586
        %599 = vst [vmem:[%s204 + $0x20] sm:$0xff] %v588
        %600 = vst [vmem:[%s204 + $0x28] sm:$0xff] %v590
        %601 = vst [vmem:[%s204 + $0x30] sm:$0xff] %v592
        %602 = vst [vmem:[%s204 + $0x38] sm:$0xff] %v594
        %s603 = sand.u32 %s97, 1
        %s604 = scalar_lea.sflag [#allocation4], %s603
        %s605 = sand.u32 %s97, 1
        %s606 = smul.addr %s605, 64
        %s607 = scalar_lea.vmem [#allocation7], %s606
        // Predicated region
        $region41: #{tpu_custom_call.1} parent=31 // pred_check
          %p608 = pneg %p107
        $region42: #{tpu_custom_call.1} parent=31 // pred_check_branch
          %610 = sbr.rel (%p608) target = $region44
        $region43: #{tpu_custom_call.1} parent=31 // pred_region
          %s611 = smul.u32 8, %s21
          %s613 = ssub.s32 1024, 1024
          %614 = vsyncadd %s604, %s613
          %s615 = smul.addr %s611, 128
          %s616 = scalar_lea.hbm %s3, %s615
          %s617 = sshll.u32 %s607, 4
          %s618 = int_to_ptr.vmem [resolvable:$true] %s617
          %623 = dma.vmem_to_hbm [thread:$0]  %s618, 1024, %s616, %s604, 128, 128, 8
        $region44: #{tpu_custom_call.1} parent=31 // pred_fallthru
          _
      $region32: #{tpu_custom_call.1} parent=5 // pred_fallthru
        _
      %p624 = scmp.le.s32.totalorder 2, %s16
      // Predicated region
      $region45: #{tpu_custom_call.1} parent=5 // pred_check
        %p625 = pneg %p624
      $region46: #{tpu_custom_call.1} parent=5 // pred_check_branch
        %627 = sbr.rel (%p625) target = $region48
      $region47: #{tpu_custom_call.1} parent=5 // pred_region
        %s628 = ssub.s32 %s16, 2
        // Predicated region
        $region49: #{tpu_custom_call.1} parent=47 // pred_check
          %p629 = pneg %p113
        $region50: #{tpu_custom_call.1} parent=47 // pred_check_branch
          %631 = sbr.rel (%p629) target = $region52
        $region51: #{tpu_custom_call.1} parent=47 // pred_region
          %s632 = sand.u32 %s98, 1
          %s633 = scalar_lea.sflag [#allocation4], %s632
          %s634 = sand.u32 %s98, 1
          %s635 = smul.addr %s634, 64
          %s636 = scalar_lea.vmem [#allocation7], %s635
          %637 = dma.done %s633, 1024
        $region52: #{tpu_custom_call.1} parent=47 // pred_fallthru
          _
      $region48: #{tpu_custom_call.1} parent=5 // pred_fallthru
        _
    $region6: #{tpu_custom_call.1} parent=1 // loop_footer
      %s20 = sadd.s32 1, %s16
    $region7: #{tpu_custom_call.1} parent=1 // loop_footer_branch
      %15 = sbr.rel target = $region3
    $region8: #{tpu_custom_call.1} parent=1 // loop_exit
      _
    %638 = vsyncpa [#allocation3], 1
    %s639 = scalar_lea.sflag [#allocation3], 1
    %640 = vsyncpa %s639, 1
    %641 = vsyncpa [#allocation6], 1
    %642 = vsyncpa [#allocation4], 1
    %s643 = scalar_lea.sflag [#allocation4], 1
    %644 = vsyncpa %s643, 1

</llo_original>
